<compile_context>
chip_gen: v5e
topology: v5e:2x2
jax: 0.10.0
libtpu: 0.0.40
codegen_flags: <defaults>
</compile_context>

<pallas_src>
import functools

import jax
import jax.numpy as jnp
from jax.experimental import pallas as pl
from jax.experimental.pallas import tpu as pltpu

H1 = 256   # hidden sizes hardcoded by the module
H2 = 128


def _round_up(x, m):
    return ((x + m - 1) // m) * m


def _score_field_kernel(x_ref, w1a_ref, c1_ref, w2_ref, b2_ref, w3_ref, c3_ref,
                        part_ref, *, true_b, tile_b, need_mask):
    # x_ref: [tile_b, D] f32 (cast to bf16 in-kernel, right before the MXU pass).
    x = x_ref[...].astype(jnp.bfloat16)
    h1 = jnp.dot(x, w1a_ref[...], preferred_element_type=jnp.float32)       # [tile_b, 256]
    h1 = jnp.maximum(h1 + c1_ref[...], 0.0)                                  # prompt+b1 folded into c1
    h2 = jnp.dot(h1.astype(jnp.bfloat16), w2_ref[...],
                 preferred_element_type=jnp.float32)                         # [tile_b, 128]
    h2 = jnp.maximum(h2 + b2_ref[...], 0.0)
    # Linear(128 -> 1) as VPU mul + XLU lane reduce; c3 = b3 - target (SMEM scalar),
    # so diff = scores - target directly.
    diff = jnp.sum(h2 * w3_ref[...], axis=-1, keepdims=True) + c3_ref[0]     # [tile_b, 1]

    if need_mask:  # tail tile: zero out padded rows (global row index >= true B)
        step = pl.program_id(0)
        row = step * tile_b + jax.lax.broadcasted_iota(jnp.int32, (tile_b, 1), 0)
        d2 = jnp.where(row < true_b, diff * diff, jnp.float32(0.0))
    else:
        d2 = diff * diff

    # Per-tile partial sum-of-squares, written lane-dense so the batch axis can be
    # "parallel" (no cross-step scalar accumulator). Mean is finished in the wrapper.
    part_ref[...] = jnp.full((1, 1, 128), jnp.sum(d2), dtype=jnp.float32)


def zero_shot_score_field_loss(trajectory_embeddings, params, success_rate=0.5,
                               tile_b=512):
    """Pallas wrapper. trajectory_embeddings: [B, D] float32. Returns scalar MSE loss."""
    B, D = trajectory_embeddings.shape
    prompt = params["prompt"]                       # [D]
    w1, b1 = params["w1"], params["b1"]             # [2D, 256], [256]
    w2, b2 = params["w2"], params["b2"]             # [256, 128], [128]
    w3, b3 = params["w3"], params["b3"]             # [128, 1],   [1]

    # Fold the prompt branch into a per-feature bias (tiny plain-JAX glue).
    w1a = w1[:D, :]                                               # trajectory half of W1
    c1 = (prompt @ w1[D:, :] + b1).reshape(1, H1).astype(jnp.float32)
    # Fold b3 and the (scalar) target into one SMEM scalar: diff = rowsum + (b3 - target).
    # TODO(synk): if success_rate ever becomes per-sample, pass it as a per-row
    # VMEM column instead of this scalar fold.
    c3 = (b3.reshape(-1) - jnp.float32(success_rate)).astype(jnp.float32)    # [1]

    # Batch tiling: TILE_B multiple of 8 (sublane), capped for tiny batches.
    tile_b = int(min(tile_b, _round_up(B, 8)))
    tile_b = _round_up(tile_b, 8)
    num_tiles = -(-B // tile_b)
    b_pad = num_tiles * tile_b

    x = trajectory_embeddings.astype(jnp.float32)
    if b_pad != B:
        x = jnp.pad(x, ((0, b_pad - B), (0, 0)))

    kernel = functools.partial(_score_field_kernel, true_b=B, tile_b=tile_b,
                               need_mask=(b_pad != B))

    partials = pl.pallas_call(
        kernel,
        out_shape=jax.ShapeDtypeStruct((num_tiles, 1, 128), jnp.float32),
        grid=(num_tiles,),
        in_specs=[
            pl.BlockSpec((tile_b, D), lambda i: (i, 0)),             # x tile (pipelined)
            pl.BlockSpec((D, H1), lambda i: (0, 0)),                 # w1a  (resident)
            pl.BlockSpec((1, H1), lambda i: (0, 0)),                 # c1   (resident)
            pl.BlockSpec((H1, H2), lambda i: (0, 0)),                # w2   (resident)
            pl.BlockSpec((1, H2), lambda i: (0, 0)),                 # b2   (resident)
            pl.BlockSpec((1, H2), lambda i: (0, 0)),                 # w3 row (resident)
            pl.BlockSpec(memory_space=pltpu.MemorySpace.SMEM),       # c3 scalar
        ],
        out_specs=pl.BlockSpec((1, 1, 128), lambda i: (i, 0, 0)),
        compiler_params=pltpu.CompilerParams(
            dimension_semantics=("parallel",),      # v7x: shard batch tiles across TCs
            vmem_limit_bytes=32 * 1024 * 1024,      # explicit; working set is ~2 MiB
        ),
    )(x,
      w1a.astype(jnp.bfloat16),
      c1,
      w2.astype(jnp.bfloat16),
      b2.reshape(1, H2).astype(jnp.float32),
      w3.reshape(1, H2).astype(jnp.float32),
      c3)

    # Finish the mean in plain JAX, dividing by the TRUE batch size.
    return jnp.sum(partials[:, 0, 0]) / jnp.float32(B)


def init_params(key, state_dim):
    """Deterministic synthetic parameters matching the module's __init__ shapes."""
    ks = jax.random.split(key, 7)

    def lin(kw, kb, fan_in, fan_out):
        bound = 1.0 / jnp.sqrt(fan_in)
        w = jax.random.uniform(kw, (fan_in, fan_out), jnp.float32, -bound, bound)
        b = jax.random.uniform(kb, (fan_out,), jnp.float32, -bound, bound)
        return w, b

    prompt = jax.random.normal(ks[0], (state_dim,), jnp.float32)
    w1, b1 = lin(ks[1], ks[2], 2 * state_dim, H1)
    w2, b2 = lin(ks[3], ks[4], H1, H2)
    w3, b3 = lin(ks[5], ks[6], H2, 1)
    return {"prompt": prompt, "w1": w1, "b1": b1,
            "w2": w2, "b2": b2, "w3": w3, "b3": b3}


def _reference_loss(trajectory_embeddings, params, success_rate=0.5):
    """Pure-JAX f32 reference of the original PyTorch module semantics."""
    B, D = trajectory_embeddings.shape
    prompt_expanded = jnp.broadcast_to(params["prompt"][None, :], (B, D))
    combined = jnp.concatenate([trajectory_embeddings, prompt_expanded], axis=-1)
    h1 = jnp.maximum(combined @ params["w1"] + params["b1"], 0.0)
    h2 = jnp.maximum(h1 @ params["w2"] + params["b2"], 0.0)
    scores = (h2 @ params["w3"] + params["b3"]).squeeze()
    return jnp.mean((scores - success_rate) ** 2)


if __name__ == "__main__":
    key = jax.random.PRNGKey(0)
    k_param, k_x1, k_x2 = jax.random.split(key, 3)

    state_dim = 32
    params = init_params(k_param, state_dim)

    # Small case (single tile, tile_b clamps to the sublane-rounded batch).
    x_small = jax.random.normal(k_x1, (8, state_dim), jnp.float32)
    loss = zero_shot_score_field_loss(x_small, params, success_rate=0.5)
    loss = jax.block_until_ready(loss)
    ref = _reference_loss(x_small, params, success_rate=0.5)
    assert jnp.allclose(loss, ref, rtol=5e-2, atol=1e-3), (loss, ref)

    # Multi-tile case with a ragged tail (exercises the batch grid + masking).
    x_big = jax.random.normal(k_x2, (300, state_dim), jnp.float32)
    loss2 = zero_shot_score_field_loss(x_big, params, success_rate=0.5, tile_b=128)
    loss2 = jax.block_until_ready(loss2)
    ref2 = _reference_loss(x_big, params, success_rate=0.5)
    assert jnp.allclose(loss2, ref2, rtol=5e-2, atol=1e-3), (loss2, ref2)

    print("KERNEL_OK")
</pallas_src>

<mosaic_0001>
module attributes {stable_mosaic.version = 11 : i64} {
  func.func @_score_field_kernel(%arg0: i32, %arg1: memref<8x32xf32, #tpu.memory_space<vmem>>, %arg2: memref<32x256xbf16, #tpu.memory_space<vmem>>, %arg3: memref<1x256xf32, #tpu.memory_space<vmem>>, %arg4: memref<256x128xbf16, #tpu.memory_space<vmem>>, %arg5: memref<1x128xf32, #tpu.memory_space<vmem>>, %arg6: memref<1x128xf32, #tpu.memory_space<vmem>>, %arg7: memref<1xf32, #tpu.memory_space<smem>>, %arg8: memref<1x1x128xf32, #tpu.memory_space<vmem>>) attributes {dimension_semantics = [#tpu.dimension_semantics<parallel>], iteration_bounds = array<i64: 1>, scalar_prefetch = 0 : i64, scratch_operands = 0 : i64, tpu.core_type = #tpu.core_type<tc>, window_params = [{transform_indices = @transform_0, window_bounds = array<i64: 8, 32>}, {pipeline_mode = #tpu.pipeline_mode<synchronous>, transform_indices = @transform_1, window_bounds = array<i64: 32, 256>}, {pipeline_mode = #tpu.pipeline_mode<synchronous>, transform_indices = @transform_2, window_bounds = array<i64: 1, 256>}, {pipeline_mode = #tpu.pipeline_mode<synchronous>, transform_indices = @transform_3, window_bounds = array<i64: 256, 128>}, {pipeline_mode = #tpu.pipeline_mode<synchronous>, transform_indices = @transform_4, window_bounds = array<i64: 1, 128>}, {pipeline_mode = #tpu.pipeline_mode<synchronous>, transform_indices = @transform_5, window_bounds = array<i64: 1, 128>}, {transform_indices = @transform_6, window_bounds = array<i64: 1>}, {transform_indices = @transform_7, window_bounds = array<i64: 1, 1, 128>}]} {
    %c0 = arith.constant 0 : index
    %c0_0 = arith.constant 0 : index
    %0 = vector.load %arg1[%c0, %c0_0] : memref<8x32xf32, #tpu.memory_space<vmem>>, vector<8x32xf32>
    %1 = arith.truncf %0 : vector<8x32xf32> to vector<8x32xbf16>
    %c0_1 = arith.constant 0 : index
    %c0_2 = arith.constant 0 : index
    %2 = vector.load %arg2[%c0_1, %c0_2] : memref<32x256xbf16, #tpu.memory_space<vmem>>, vector<32x256xbf16>
    %cst = arith.constant dense<0.000000e+00> : vector<8x256xf32>
    %3 = tpu.matmul %1, %2, %cst {dimension_numbers = #tpu.dot_dimension_numbers<[1], [0], [0], [1], [0, 0, 1, 1], [], []>} : vector<8x32xbf16>, vector<32x256xbf16>, vector<8x256xf32> -> vector<8x256xf32>
    %c0_3 = arith.constant 0 : index
    %c0_4 = arith.constant 0 : index
    %4 = vector.load %arg3[%c0_3, %c0_4] : memref<1x256xf32, #tpu.memory_space<vmem>>, vector<1x256xf32>
    %5 = vector.broadcast %4 : vector<1x256xf32> to vector<8x256xf32>
    %6 = arith.addf %3, %5 : vector<8x256xf32>
    %cst_5 = arith.constant 0.000000e+00 : f32
    %7 = vector.broadcast %cst_5 : f32 to vector<8x256xf32>
    %8 = arith.maximumf %6, %7 : vector<8x256xf32>
    %9 = arith.truncf %8 : vector<8x256xf32> to vector<8x256xbf16>
    %c0_6 = arith.constant 0 : index
    %c0_7 = arith.constant 0 : index
    %10 = vector.load %arg4[%c0_6, %c0_7] : memref<256x128xbf16, #tpu.memory_space<vmem>>, vector<256x128xbf16>
    %cst_8 = arith.constant dense<0.000000e+00> : vector<8x128xf32>
    %11 = tpu.matmul %9, %10, %cst_8 {dimension_numbers = #tpu.dot_dimension_numbers<[1], [0], [0], [1], [0, 0, 1, 1], [], []>} : vector<8x256xbf16>, vector<256x128xbf16>, vector<8x128xf32> -> vector<8x128xf32>
    %c0_9 = arith.constant 0 : index
    %c0_10 = arith.constant 0 : index
    %12 = vector.load %arg5[%c0_9, %c0_10] : memref<1x128xf32, #tpu.memory_space<vmem>>, vector<1x128xf32>
    %13 = vector.broadcast %12 : vector<1x128xf32> to vector<8x128xf32>
    %14 = arith.addf %11, %13 : vector<8x128xf32>
    %cst_11 = arith.constant 0.000000e+00 : f32
    %15 = vector.broadcast %cst_11 : f32 to vector<8x128xf32>
    %16 = arith.maximumf %14, %15 : vector<8x128xf32>
    %c0_12 = arith.constant 0 : index
    %c0_13 = arith.constant 0 : index
    %17 = vector.load %arg6[%c0_12, %c0_13] : memref<1x128xf32, #tpu.memory_space<vmem>>, vector<1x128xf32>
    %18 = vector.broadcast %17 : vector<1x128xf32> to vector<8x128xf32>
    %19 = arith.mulf %16, %18 : vector<8x128xf32>
    %cst_14 = arith.constant dense<0.000000e+00> : vector<8xf32>
    %20 = vector.multi_reduction <add>, %19, %cst_14 [1] : vector<8x128xf32> to vector<8xf32>
    %21 = vector.shape_cast %20 : vector<8xf32> to vector<8x1xf32>
    %c0_15 = arith.constant 0 : index
    %22 = memref.load %arg7[%c0_15] : memref<1xf32, #tpu.memory_space<smem>>
    %23 = vector.broadcast %22 : f32 to vector<8x1xf32>
    %24 = arith.addf %21, %23 : vector<8x1xf32>
    %25 = arith.mulf %24, %24 : vector<8x1xf32>
    %26 = vector.shape_cast %25 : vector<8x1xf32> to vector<1x8x1xf32>
    %cst_16 = arith.constant dense<0.000000e+00> : vector<1xf32>
    %27 = vector.multi_reduction <add>, %26, %cst_16 [1, 2] : vector<1x8x1xf32> to vector<1xf32>
    %28 = vector.shape_cast %27 : vector<1xf32> to vector<1x1x1xf32>
    %29 = vector.extract %28[0, 0, 0] : f32 from vector<1x1x1xf32>
    %30 = vector.broadcast %29 : f32 to vector<1x1x128xf32>
    %c0_17 = arith.constant 0 : index
    %c0_18 = arith.constant 0 : index
    %c0_19 = arith.constant 0 : index
    %31 = vector.load %arg8[%c0_17, %c0_18, %c0_19] : memref<1x1x128xf32, #tpu.memory_space<vmem>>, vector<1x1x128xf32>
    tpu.vector_store %arg8[%c0_17, %c0_18, %c0_19], %30 {strides = array<i32>} : memref<1x1x128xf32, #tpu.memory_space<vmem>>, vector<1x1x128xf32>,
    return
  }
  func.func @transform_0(%arg0: i32) -> (i32, i32) {
    %c0_i32 = arith.constant 0 : i32
    %c0_i32_0 = arith.constant 0 : i32
    return %arg0, %c0_i32 : i32, i32
  }
  func.func @transform_1(%arg0: i32) -> (i32, i32) {
    %c0_i32 = arith.constant 0 : i32
    %c0_i32_0 = arith.constant 0 : i32
    %c0_i32_1 = arith.constant 0 : i32
    return %c0_i32, %c0_i32_0 : i32, i32
  }
  func.func @transform_2(%arg0: i32) -> (i32, i32) {
    %c0_i32 = arith.constant 0 : i32
    %c0_i32_0 = arith.constant 0 : i32
    %c0_i32_1 = arith.constant 0 : i32
    return %c0_i32, %c0_i32_0 : i32, i32
  }
  func.func @transform_3(%arg0: i32) -> (i32, i32) {
    %c0_i32 = arith.constant 0 : i32
    %c0_i32_0 = arith.constant 0 : i32
    %c0_i32_1 = arith.constant 0 : i32
    return %c0_i32, %c0_i32_0 : i32, i32
  }
  func.func @transform_4(%arg0: i32) -> (i32, i32) {
    %c0_i32 = arith.constant 0 : i32
    %c0_i32_0 = arith.constant 0 : i32
    %c0_i32_1 = arith.constant 0 : i32
    return %c0_i32, %c0_i32_0 : i32, i32
  }
  func.func @transform_5(%arg0: i32) -> (i32, i32) {
    %c0_i32 = arith.constant 0 : i32
    %c0_i32_0 = arith.constant 0 : i32
    %c0_i32_1 = arith.constant 0 : i32
    return %c0_i32, %c0_i32_0 : i32, i32
  }
  func.func @transform_6(%arg0: i32) -> i32 {
    %c0_i32 = arith.constant 0 : i32
    %c0_i32_0 = arith.constant 0 : i32
    return %c0_i32 : i32
  }
  func.func @transform_7(%arg0: i32) -> (i32, i32, i32) {
    %c0_i32 = arith.constant 0 : i32
    %c0_i32_0 = arith.constant 0 : i32
    %c0_i32_1 = arith.constant 0 : i32
    return %arg0, %c0_i32, %c0_i32_0 : i32, i32, i32
  }
}

</mosaic_0001>

<llo_original>
// kernel: tpu_custom_call.1
$region0: #{tpu_custom_call.1}
  #allocation0 [shape = 'u32[]', space=smem, size = 0x4, offset = 0x4, fixed_abs, tag = 'smem constant byte address 0x4 - core index']
  #allocation1 [shape = 'u32[72,128]{1,0:T(1,128)}', space=vmem, size = 0x9000, scoped, tag = 'internal scratch']
  #allocation2 [shape = 'f32[1]{0:T(128)S(6)}', space=smem, size = 0x200, scoped, tag = 'scoped memory for tpu_custom_call.1']
  %s0 = inlined_call_operand.hbm [shape: f32[8,32], index: 0, kind: input, shape index: {}]
  %s1 = inlined_call_operand.hbm [shape: bf16[32,256], index: 1, kind: input, shape index: {}]
  %s2 = inlined_call_operand.vmem [shape: f32[1,256], index: 2, kind: input, shape index: {}]
  %s3 = inlined_call_operand.hbm [shape: bf16[256,128], index: 3, kind: input, shape index: {}]
  %s4 = inlined_call_operand.vmem [shape: f32[1,128], index: 4, kind: input, shape index: {}]
  %s5 = inlined_call_operand.vmem [shape: f32[1,128], index: 5, kind: input, shape index: {}]
  %s6 = inlined_call_operand.<no memory space> [shape: f32[1], index: 6, kind: input, shape index: {}]
  %s7 = inlined_call_operand.hbm [shape: f32[1,1,128], index: 7, kind: output, shape index: {}]
  %s8 = sld [smem:[#allocation0]]
  $region50: #{tpu_custom_call.1} parent=0
    _
  %s10 = ssub.s32 1, %s8
  %s11 = scalar_select 0, %s10, %s8
  %12 = sst [smem:[#allocation2]] %s6
  $region1: #{tpu_custom_call.1} parent=0
    #allocation3 [shape = 'u8[4096]{0}', space=vmem, size = 0x1000, scoped, tag = 'input window, operand 0, single buffered']
    #allocation4 [shape = 's32[1]{0}', space=sflag, size = 0x4, scoped, tag = 'scoped memory for tpu_custom_call.1']
    #allocation5 [shape = 's32[1]{0}', space=sflag, size = 0x4, scoped, tag = 'scoped memory for tpu_custom_call.1']
    #allocation6 [shape = 'u8[16384]{0}', space=vmem, size = 0x4000, scoped, tag = 'input window, operand 1, single buffered']
    #allocation7 [shape = 's32[1]{0}', space=sflag, size = 0x4, scoped, tag = 'scoped memory for tpu_custom_call.1']
    #allocation8 [shape = 'u8[65536]{0}', space=vmem, size = 0x10000, scoped, tag = 'input window, operand 3, single buffered']
    #allocation9 [shape = 'u8[512]{0}', space=vmem, size = 0x400, scoped, tag = 'output window, operand 0, single buffered']
    %13 = vsyncpa [#allocation4], 0
    %14 = vsyncpa [#allocation7], 0
    %15 = vsyncpa [#allocation5], 0
    // Predicated region
    $region2: #{tpu_custom_call.1} parent=1 // pred_check
      _
    $region3: #{tpu_custom_call.1} parent=1 // pred_check_branch
      %17 = sbr.rel (0) target = $region5
    $region4: #{tpu_custom_call.1} parent=1 // pred_region
      %19 = vsyncadd [#allocation4], 0
      %s21 = sshll.u32 %s0, 4
      %s22 = int_to_ptr.hbm [resolvable:$true] %s21
      %s23 = sshll.u32 [#allocation3], 4
      %s24 = int_to_ptr.vmem [resolvable:$true] %s23
      %26 = dma.hbm_to_vmem [thread:$0]  %s22, 128, %s24, [#allocation4]
    $region5: #{tpu_custom_call.1} parent=1 // pred_fallthru
      _
    // Predicated region
    $region6: #{tpu_custom_call.1} parent=1 // pred_check
      _
    $region7: #{tpu_custom_call.1} parent=1 // pred_check_branch
      %28 = sbr.rel (0) target = $region9
    $region8: #{tpu_custom_call.1} parent=1 // pred_region
      %30 = vsyncadd [#allocation7], 0
      %s31 = sshll.u32 %s1, 4
      %s32 = int_to_ptr.hbm [resolvable:$true] %s31
      %s33 = sshll.u32 [#allocation6], 4
      %s34 = int_to_ptr.vmem [resolvable:$true] %s33
      %39 = dma.hbm_to_vmem [thread:$0]  %s32, 512, %s34, [#allocation7], 128, 128, 8
    $region9: #{tpu_custom_call.1} parent=1 // pred_fallthru
      _
    // Predicated region
    $region10: #{tpu_custom_call.1} parent=1 // pred_check
      _
    $region11: #{tpu_custom_call.1} parent=1 // pred_check_branch
      %41 = sbr.rel (0) target = $region13
    $region12: #{tpu_custom_call.1} parent=1 // pred_region
      _
    $region13: #{tpu_custom_call.1} parent=1 // pred_fallthru
      _
    // Predicated region
    $region14: #{tpu_custom_call.1} parent=1 // pred_check
      _
    $region15: #{tpu_custom_call.1} parent=1 // pred_check_branch
      %43 = sbr.rel (0) target = $region17
    $region16: #{tpu_custom_call.1} parent=1 // pred_region
      %45 = vsyncadd [#allocation7], 0
      %s46 = sshll.u32 %s3, 4
      %s47 = int_to_ptr.hbm [resolvable:$true] %s46
      %s48 = sshll.u32 [#allocation8], 4
      %s49 = int_to_ptr.vmem [resolvable:$true] %s48
      %54 = dma.hbm_to_vmem [thread:$0]  %s47, 2048, %s49, [#allocation7], 64, 64, 4
    $region17: #{tpu_custom_call.1} parent=1 // pred_fallthru
      _
    // Predicated region
    $region18: #{tpu_custom_call.1} parent=1 // pred_check
      _
    $region19: #{tpu_custom_call.1} parent=1 // pred_check_branch
      %56 = sbr.rel (0) target = $region21
    $region20: #{tpu_custom_call.1} parent=1 // pred_region
      _
    $region21: #{tpu_custom_call.1} parent=1 // pred_fallthru
      _
    // Predicated region
    $region22: #{tpu_custom_call.1} parent=1 // pred_check
      _
    $region23: #{tpu_custom_call.1} parent=1 // pred_check_branch
      %58 = sbr.rel (0) target = $region25
    $region24: #{tpu_custom_call.1} parent=1 // pred_region
      _
    $region25: #{tpu_custom_call.1} parent=1 // pred_fallthru
      _
    // Predicated region
    $region26: #{tpu_custom_call.1} parent=1 // pred_check
      _
    $region27: #{tpu_custom_call.1} parent=1 // pred_check_branch
      %60 = sbr.rel (0) target = $region29
    $region28: #{tpu_custom_call.1} parent=1 // pred_region
      _
    $region29: #{tpu_custom_call.1} parent=1 // pred_fallthru
      _
    // Predicated region
    $region30: #{tpu_custom_call.1} parent=1 // pred_check
      _
    $region31: #{tpu_custom_call.1} parent=1 // pred_check_branch
      %62 = sbr.rel (0) target = $region33
    $region32: #{tpu_custom_call.1} parent=1 // pred_region
      %64 = dma.done [#allocation4], 128
    $region33: #{tpu_custom_call.1} parent=1 // pred_fallthru
      _
    // Predicated region
    $region34: #{tpu_custom_call.1} parent=1 // pred_check
      _
    $region35: #{tpu_custom_call.1} parent=1 // pred_check_branch
      %66 = sbr.rel (0) target = $region37
    $region36: #{tpu_custom_call.1} parent=1 // pred_region
      %68 = dma.done [#allocation7], 512
    $region37: #{tpu_custom_call.1} parent=1 // pred_fallthru
      _
    // Predicated region
    $region38: #{tpu_custom_call.1} parent=1 // pred_check
      _
    $region39: #{tpu_custom_call.1} parent=1 // pred_check_branch
      %70 = sbr.rel (0) target = $region41
    $region40: #{tpu_custom_call.1} parent=1 // pred_region
      %72 = dma.done [#allocation7], 2048
    $region41: #{tpu_custom_call.1} parent=1 // pred_fallthru
      _
    %v74 = vld [vmem:[#allocation3] sm:$0xff]
    %v75 = vpack.c.bf16 %v74, %v74
    %v76 = vld [vmem:[#allocation6] sm:$0xff]
    %v77 = vld [vmem:[#allocation6 + $0x8] sm:$0xff]
    %v78 = vld [vmem:[#allocation6 + $0x10] sm:$0xff]
    %v79 = vld [vmem:[#allocation6 + $0x18] sm:$0xff]
    %v80 = vld [vmem:[%s2] sm:$0x3]
    %v82 = vperm.slane %v80, 0
    %v83 = vperm.slane %v80, 1
    %v90 = vunpack.c.l.b16 %v76
    %v91 = vunpack.c.h.b16 %v76
    %v92 = vunpack.c.l.b16 %v77
    %v93 = vunpack.c.h.b16 %v77
    %v94 = vunpack.c.l.b16 %v78
    %v95 = vunpack.c.h.b16 %v78
    %v96 = vunpack.c.l.b16 %v79
    %v97 = vunpack.c.h.b16 %v79
    %v98 = vpack.c.b16 %v92, %v90
    %v99 = vpack.c.b16 %v93, %v91
    %v100 = vpack.c.b16 %v96, %v94
    %v101 = vpack.c.b16 %v97, %v95
    %vm106 = vcmask 261120
    %v108 = vsel %vm106, %v75, 0
    %110 = vmatpush.bf16.msra.mxu0 0
    %111 = vmatpush.bf16.msra.mxu0 0
    %112 = vmatpush.bf16.msra.mxu0 0
    %113 = vmatpush.bf16.msra.mxu0 0
    %114 = vmatpush.bf16.msra.mxu0 0
    %115 = vmatpush.bf16.msra.mxu0 0
    %116 = vmatpush.bf16.msra.mxu0 %v100
    %117 = vmatpush.bf16.msra.mxu0 %v98
    %118 = vmatmul.bf16.gmra.mxu0 %v108
    %v119 = vpop.f32.mrf.mxu0
    %v120 = vadd.f32 %v82, %v119
    %v121 = vpop.f32.mrf.mxu0
    %122 = vdwg.mxu0
    %123 = vmatpush.bf16.msra.mxu0 0
    %124 = vmatpush.bf16.msra.mxu0 0
    %125 = vmatpush.bf16.msra.mxu0 0
    %126 = vmatpush.bf16.msra.mxu0 0
    %127 = vmatpush.bf16.msra.mxu0 0
    %128 = vmatpush.bf16.msra.mxu0 0
    %129 = vmatpush.bf16.msra.mxu0 %v101
    %130 = vmatpush.bf16.msra.mxu0 %v99
    %131 = vmatmul.bf16.gmra.mxu0 %v108
    %v132 = vpop.f32.mrf.mxu0
    %v133 = vadd.f32 %v83, %v132
    %v134 = vpop.f32.mrf.mxu0
    %135 = vdwg.mxu0
    %v136 = vmax.f32 %v120, 0.0
    %v137 = vmax.f32 %v133, 0.0
    %v138 = vpack.c.bf16 %v136, %v136
    %v139 = vpack.c.bf16 %v137, %v137
    %v140 = vld [vmem:[#allocation8] sm:$0xf]
    %v141 = vld [vmem:[#allocation8 + $0x4] sm:$0xf]
    %v142 = vld [vmem:[#allocation8 + $0x8] sm:$0xf]
    %v143 = vld [vmem:[#allocation8 + $0xc] sm:$0xf]
    %v144 = vld [vmem:[#allocation8 + $0x10] sm:$0xf]
    %v145 = vld [vmem:[#allocation8 + $0x14] sm:$0xf]
    %v146 = vld [vmem:[#allocation8 + $0x18] sm:$0xf]
    %v147 = vld [vmem:[#allocation8 + $0x1c] sm:$0xf]
    %v148 = vld [vmem:[#allocation8 + $0x20] sm:$0xf]
    %v149 = vld [vmem:[#allocation8 + $0x24] sm:$0xf]
    %v150 = vld [vmem:[#allocation8 + $0x28] sm:$0xf]
    %v151 = vld [vmem:[#allocation8 + $0x2c] sm:$0xf]
    %v152 = vld [vmem:[#allocation8 + $0x30] sm:$0xf]
    %v153 = vld [vmem:[#allocation8 + $0x34] sm:$0xf]
    %v154 = vld [vmem:[#allocation8 + $0x38] sm:$0xf]
    %v155 = vld [vmem:[#allocation8 + $0x3c] sm:$0xf]
    %v156 = vld [vmem:[#allocation8 + $0x40] sm:$0xf]
    %v157 = vld [vmem:[#allocation8 + $0x44] sm:$0xf]
    %v158 = vld [vmem:[#allocation8 + $0x48] sm:$0xf]
    %v159 = vld [vmem:[#allocation8 + $0x4c] sm:$0xf]
    %v160 = vld [vmem:[#allocation8 + $0x50] sm:$0xf]
    %v161 = vld [vmem:[#allocation8 + $0x54] sm:$0xf]
    %v162 = vld [vmem:[#allocation8 + $0x58] sm:$0xf]
    %v163 = vld [vmem:[#allocation8 + $0x5c] sm:$0xf]
    %v164 = vld [vmem:[#allocation8 + $0x60] sm:$0xf]
    %v165 = vld [vmem:[#allocation8 + $0x64] sm:$0xf]
    %v166 = vld [vmem:[#allocation8 + $0x68] sm:$0xf]
    %v167 = vld [vmem:[#allocation8 + $0x6c] sm:$0xf]
    %v168 = vld [vmem:[#allocation8 + $0x70] sm:$0xf]
    %v169 = vld [vmem:[#allocation8 + $0x74] sm:$0xf]
    %v170 = vld [vmem:[#allocation8 + $0x78] sm:$0xf]
    %v171 = vld [vmem:[#allocation8 + $0x7c] sm:$0xf]
    %v172 = vld [vmem:[%s4] sm:$0x1]
    %v174 = vperm.slane %v172, 0
    %v208 = vunpack.c.l.b16 %v140
    %v209 = vunpack.c.l.b16 %v141
    %v210 = vunpack.c.l.b16 %v142
    %v211 = vunpack.c.l.b16 %v143
    %v212 = vunpack.c.l.b16 %v144
    %v213 = vunpack.c.l.b16 %v145
    %v214 = vunpack.c.l.b16 %v146
    %v215 = vunpack.c.l.b16 %v147
    %v216 = vunpack.c.l.b16 %v148
    %v217 = vunpack.c.l.b16 %v149
    %v218 = vunpack.c.l.b16 %v150
    %v219 = vunpack.c.l.b16 %v151
    %v220 = vunpack.c.l.b16 %v152
    %v221 = vunpack.c.l.b16 %v153
    %v222 = vunpack.c.l.b16 %v154
    %v223 = vunpack.c.l.b16 %v155
    %v224 = vunpack.c.l.b16 %v156
    %v225 = vunpack.c.l.b16 %v157
    %v226 = vunpack.c.l.b16 %v158
    %v227 = vunpack.c.l.b16 %v159
    %v228 = vunpack.c.l.b16 %v160
    %v229 = vunpack.c.l.b16 %v161
    %v230 = vunpack.c.l.b16 %v162
    %v231 = vunpack.c.l.b16 %v163
    %v232 = vunpack.c.l.b16 %v164
    %v233 = vunpack.c.l.b16 %v165
    %v234 = vunpack.c.l.b16 %v166
    %v235 = vunpack.c.l.b16 %v167
    %v236 = vunpack.c.l.b16 %v168
    %v237 = vunpack.c.l.b16 %v169
    %v238 = vunpack.c.l.b16 %v170
    %v239 = vunpack.c.l.b16 %v171
    %v240 = vpack.c.b16 %v209, %v208
    %v241 = vpack.c.b16 %v211, %v210
    %v242 = vpack.c.b16 %v213, %v212
    %v243 = vpack.c.b16 %v215, %v214
    %v244 = vpack.c.b16 %v217, %v216
    %v245 = vpack.c.b16 %v219, %v218
    %v246 = vpack.c.b16 %v221, %v220
    %v247 = vpack.c.b16 %v223, %v222
    %v248 = vpack.c.b16 %v225, %v224
    %v249 = vpack.c.b16 %v227, %v226
    %v250 = vpack.c.b16 %v229, %v228
    %v251 = vpack.c.b16 %v231, %v230
    %v252 = vpack.c.b16 %v233, %v232
    %v253 = vpack.c.b16 %v235, %v234
    %v254 = vpack.c.b16 %v237, %v236
    %v255 = vpack.c.b16 %v239, %v238
    %272 = vmatpush.bf16.msra.mxu0 %v247
    %273 = vmatpush.bf16.msra.mxu0 %v246
    %274 = vmatpush.bf16.msra.mxu0 %v245
    %275 = vmatpush.bf16.msra.mxu0 %v244
    %276 = vmatpush.bf16.msra.mxu0 %v243
    %277 = vmatpush.bf16.msra.mxu0 %v242
    %278 = vmatpush.bf16.msra.mxu0 %v241
    %279 = vmatpush.bf16.msra.mxu0 %v240
    %280 = vmatmul.bf16.gmra.mxu0 %v138
    %v281 = vpop.f32.mrf.mxu0
    %v282 = vadd.f32 %v174, %v281
    %v283 = vpop.f32.mrf.mxu0
    %284 = vdwg.mxu0
    %285 = vmatpush.bf16.msra.mxu0 %v255
    %286 = vmatpush.bf16.msra.mxu0 %v254
    %287 = vmatpush.bf16.msra.mxu0 %v253
    %288 = vmatpush.bf16.msra.mxu0 %v252
    %289 = vmatpush.bf16.msra.mxu0 %v251
    %290 = vmatpush.bf16.msra.mxu0 %v250
    %291 = vmatpush.bf16.msra.mxu0 %v249
    %292 = vmatpush.bf16.msra.mxu0 %v248
    %293 = vmatmul.bf16.gmra.mxu0 %v139
    %v294 = vpop.f32.mrf.mxu0
    %v295 = vadd.f32 %v282, %v294
    %v296 = vpop.f32.mrf.mxu0
    %297 = vdwg.mxu0
    %v298 = vmax.f32 %v295, 0.0
    %v299 = vld [vmem:[%s5] sm:$0x1]
    %v301 = vperm.slane %v299, 0
    %v303 = vmul.f32 %v298, %v301
    %304 = vadd.xlane.f32.xlu0 %v303
    %v305 = vpop.xlane.xlu0 %304
    %s306 = sld [smem:[#allocation2]]
    %v307 = vstv %s306
    %v308 = vadd.f32 %v305, %v307
    %v309 = vmul.f32 %v308, %v308
    %vm310 = vcmask 7168
    %v311 = vsel %vm310, %v309, 0.0
    %312 = vadd.xlane.f32.xlu0 %v311
    %v313 = vpop.xlane.xlu0 %312
    %v314 = vrot.slane %v313, 4
    %v315 = vadd.f32 %v313, %v314
    %v316 = vrot.slane %v315, 2
    %v317 = vadd.f32 %v315, %v316
    %v318 = vrot.slane %v317, 1
    %v319 = vadd.f32 %v317, %v318
    %s320 = vtos %v319
    %v321 = vstv %s320
    %322 = vst [vmem:[#allocation9] sm:$0x1] %v321
    // Predicated region
    $region42: #{tpu_custom_call.1} parent=1 // pred_check
      _
    $region43: #{tpu_custom_call.1} parent=1 // pred_check_branch
      %324 = sbr.rel (0) target = $region45
    $region44: #{tpu_custom_call.1} parent=1 // pred_region
      %326 = vsyncadd [#allocation5], 0
      %s328 = sshll.u32 [#allocation9], 4
      %s329 = int_to_ptr.vmem [resolvable:$true] %s328
      %s330 = sshll.u32 %s7, 4
      %s331 = int_to_ptr.hbm [resolvable:$true] %s330
      %333 = dma.vmem_to_hbm [thread:$0]  %s329, 16, %s331, [#allocation5]
    $region45: #{tpu_custom_call.1} parent=1 // pred_fallthru
      _
    // Predicated region
    $region46: #{tpu_custom_call.1} parent=1 // pred_check
      _
    $region47: #{tpu_custom_call.1} parent=1 // pred_check_branch
      %335 = sbr.rel (0) target = $region49
    $region48: #{tpu_custom_call.1} parent=1 // pred_region
      %337 = dma.done [#allocation5], 16
    $region49: #{tpu_custom_call.1} parent=1 // pred_fallthru
      _
    %338 = vsyncpa [#allocation4], 1
    %339 = vsyncpa [#allocation7], 1
    %340 = vsyncpa [#allocation5], 1

</llo_original>
